<compile_context>
chip_gen: v7x
topology: tpu7x:2x2x1
jax: 0.10.0
libtpu: 0.0.40
codegen_flags: <defaults>
</compile_context>

<pallas_src>
import functools

import jax
import jax.numpy as jnp
from jax.experimental import pallas as pl
from jax.experimental.pallas import tpu as pltpu

KERNEL_SIZES = (1, 5, 10)
N_FILTERS = 32                       # n_filters_per_branch
BN_EPS = 1e-5
MAX_K = max(KERNEL_SIZES)            # 10
PAD_LEFT = (MAX_K - 1) // 2          # PyTorch padding='same': left = (k-1)//2
PAD_RIGHT = (MAX_K - 1) - PAD_LEFT   # extra pad goes on the right (k even)
HALO = 16                            # MAX_K-1 rounded up to a sublane multiple
LANE = 128
ROWS_PER_STEP = 1024                 # target time rows of work per grid step


def _round_up(x, m):
    return (x + m - 1) // m * m


# Eigen / XLA float32 erf rational approximation — matches nn.GELU() (exact,
# erf-based) to f32 roundoff using only elementwise ops Mosaic lowers.
_ERF_ALPHA = (0.00022905065861350646, 0.0034082910107109506,
              0.050955695062380861, 0.18520832239976145, 1.128379143519084)
_ERF_BETA = (-1.1791602954361697e-07, 2.3547966471313185e-05,
             0.0010179625278914885, 0.014070470171167667,
             0.11098505178285362, 0.49746925110067538, 1.0)


def _erf_f32(x, approx_recip):
    x = jnp.clip(x, -3.832506856900711, 3.832506856900711)
    x2 = x * x
    p = jnp.full_like(x2, _ERF_ALPHA[0])
    for c in _ERF_ALPHA[1:]:
        p = p * x2 + c
    q = jnp.full_like(x2, _ERF_BETA[0])
    for c in _ERF_BETA[1:]:
        q = q * x2 + c
    # approx=True -> pure EUP vrcp (no VALU Newton step); used on the bf16
    # fast path.  The f32 path keeps the refined reciprocal for 2e-3 accuracy.
    return (x * p) * pl.reciprocal(q, approx=approx_recip)


def _gelu_exact(x, approx_recip):
    return 0.5 * x * (1.0 + _erf_f32(x * 0.7071067811865476, approx_recip))


# ----------------------------- Pallas kernel --------------------------------
def _frontend_kernel(x_ref, wc_ref, bc_ref, wp_ref, bp_ref, out_ref, *,
                     tb, approx_recip):
    """One (batch b, time-block t) grid step.

    x_ref  : (1, T_pad, E)   whole zero-padded time axis of batch b
    wc_ref : (MAX_K, E, Fp)  per-tap conv weights, 3 branches packed on lanes
    bc_ref : (1, Fp)         conv bias (f32)
    wp_ref : (Fp, H)         1x1 projection, eval-BN scale folded in
    bp_ref : (1, H)          projection bias, eval-BN shift folded in (f32)
    out_ref: (1, tb, H)
    """
    t0 = pl.multiple_of(pl.program_id(1) * tb, 8)
    # Sublane-aligned halo window covering all MAX_K shifted tap views.
    halo = x_ref[0, pl.ds(t0, tb + HALO), :]                  # (tb+HALO, E)

    # In-VMEM unfold: per-tap MXU dots with f32 accumulation (no HBM im2col).
    acc = jnp.dot(halo[0:tb, :], wc_ref[0],
                  preferred_element_type=jnp.float32)          # (tb, Fp)
    for g in range(1, MAX_K):
        acc += jnp.dot(halo[g:g + tb, :], wc_ref[g],
                       preferred_element_type=jnp.float32)

    # conv bias + exact (erf) GELU in f32; eval-BN / Dropout are folded away.
    h = _gelu_exact(acc + bc_ref[...], approx_recip)
    h = h.astype(wp_ref.dtype)

    out = jnp.dot(h, wp_ref[...], preferred_element_type=jnp.float32)
    out_ref[0] = (out + bp_ref[...]).astype(out_ref.dtype)


# ------------------------------- wrapper -------------------------------------
def binned_ecog_frontend(x, packed):
    """x: (B, T, E) — the layout the PyTorch module receives. Returns (B,T,H) f32."""
    B, T, E = x.shape
    wc, bc, wp, bp = packed["wc"], packed["bc"], packed["wp"], packed["bp"]
    max_k, e_w, Fp = wc.shape
    H = wp.shape[1]
    assert max_k == MAX_K and e_w == E

    compute_dtype = wc.dtype
    approx_recip = bool(wc.dtype == jnp.bfloat16)

    # Time-block size: big enough to amortize the ~0.35us grid-step overhead,
    # and at least two grid steps overall so the v7x dual-TC split has work.
    tb = min(_round_up(T, 8), ROWS_PER_STEP)
    if B == 1 and T > 8:
        tb = min(tb, max(8, _round_up(-(-T // 2), 8)))
    t_round = _round_up(T, tb)
    nt = t_round // tb
    t_pad = t_round + HALO

    # 'same' padding for the widest branch (left 4 / right >=5) plus block /
    # halo round-up; single fused pad+cast pass in the wrapper.
    xpad = jnp.pad(x.astype(compute_dtype),
                   ((0, 0), (PAD_LEFT, t_pad - T - PAD_LEFT), (0, 0)))

    out = pl.pallas_call(
        functools.partial(_frontend_kernel, tb=tb, approx_recip=approx_recip),
        out_shape=jax.ShapeDtypeStruct((B, t_round, H), jnp.float32),
        grid_spec=pltpu.PrefetchScalarGridSpec(
            num_scalar_prefetch=0,
            grid=(B, nt),
            in_specs=[
                # Full padded time slab of batch b: block index constant in t,
                # so the pipeline DMAs it from HBM only once per batch element.
                pl.BlockSpec((1, t_pad, E), lambda b, t: (b, 0, 0)),
                # Constant-index weights/biases: DMA'd once, never re-copied.
                pl.BlockSpec((MAX_K, E, Fp), lambda b, t: (0, 0, 0)),
                pl.BlockSpec((1, Fp), lambda b, t: (0, 0)),
                pl.BlockSpec((Fp, H), lambda b, t: (0, 0)),
                pl.BlockSpec((1, H), lambda b, t: (0, 0)),
            ],
            out_specs=pl.BlockSpec((1, tb, H), lambda b, t: (b, t, 0)),
        ),
        compiler_params=pltpu.CompilerParams(
            dimension_semantics=("parallel", "parallel")),
    )(xpad, wc, bc, wp, bp)

    return out[:, :T, :]


# --------------------------- parameters (synthetic) ---------------------------
def init_raw_params(key, n_electrodes, hidden_dim):
    """Deterministic parameters in PyTorch layouts."""
    raw = {}
    for k in KERNEL_SIZES:
        key, k1, k2, k3, k4, k5, k6 = jax.random.split(key, 7)
        raw[f"conv{k}_w"] = 0.1 * jax.random.normal(
            k1, (N_FILTERS, n_electrodes, k), jnp.float32)      # (C_out, C_in, k)
        raw[f"conv{k}_b"] = 0.1 * jax.random.normal(k2, (N_FILTERS,), jnp.float32)
        raw[f"bn{k}_gamma"] = 1.0 + 0.1 * jax.random.normal(k3, (N_FILTERS,), jnp.float32)
        raw[f"bn{k}_beta"] = 0.1 * jax.random.normal(k4, (N_FILTERS,), jnp.float32)
        raw[f"bn{k}_mean"] = 0.1 * jax.random.normal(k5, (N_FILTERS,), jnp.float32)
        raw[f"bn{k}_var"] = 1.0 + 0.1 * jax.random.uniform(k6, (N_FILTERS,), jnp.float32)
    key, kp1, kp2 = jax.random.split(key, 3)
    total = N_FILTERS * len(KERNEL_SIZES)
    raw["proj_w"] = 0.1 * jax.random.normal(kp1, (hidden_dim, total), jnp.float32)
    raw["proj_b"] = 0.1 * jax.random.normal(kp2, (hidden_dim,), jnp.float32)
    return raw


def pack_params(raw, n_electrodes, hidden_dim, compute_dtype=jnp.bfloat16):
    """Pack conv taps as (MAX_K, E, Fp) with branch filters side-by-side on the
    128-padded lane axis, fold eval-mode BN into the 1x1 projection, and cast
    the streamed weight slabs to the compute dtype (biases stay f32)."""
    E = n_electrodes
    F = N_FILTERS
    f_tot = F * len(KERNEL_SIZES)                 # 96
    f_pad = _round_up(f_tot, LANE)                # 128

    wc = jnp.zeros((MAX_K, E, f_pad), jnp.float32)
    bc = jnp.zeros((1, f_pad), jnp.float32)
    s_all = jnp.zeros((f_tot,), jnp.float32)
    t_all = jnp.zeros((f_tot,), jnp.float32)
    for bi, k in enumerate(KERNEL_SIZES):
        w = raw[f"conv{k}_w"]                     # (F, E, k) PyTorch Conv1d layout
        lp = (k - 1) // 2                         # per-branch 'same' left pad
        c0 = bi * F
        for j in range(k):
            g = j - lp + PAD_LEFT                 # slot inside the max_k window
            wc = wc.at[g, :, c0:c0 + F].set(w[:, :, j].T)
        bc = bc.at[0, c0:c0 + F].set(raw[f"conv{k}_b"])
        scale = raw[f"bn{k}_gamma"] / jnp.sqrt(raw[f"bn{k}_var"] + BN_EPS)
        shift = raw[f"bn{k}_beta"] - raw[f"bn{k}_mean"] * scale
        s_all = s_all.at[c0:c0 + F].set(scale)
        t_all = t_all.at[c0:c0 + F].set(shift)

    proj_w = raw["proj_w"]                        # (H, 3F)
    wp = jnp.zeros((f_pad, hidden_dim), jnp.float32)
    wp = wp.at[:f_tot, :].set((proj_w * s_all[None, :]).T)    # fold BN scale
    bp = (raw["proj_b"] + proj_w @ t_all)[None, :]            # fold BN shift
    return {"wc": wc.astype(compute_dtype), "bc": bc,
            "wp": wp.astype(compute_dtype), "bp": bp}


# ---------------------------- pure-JAX reference ------------------------------
def reference(x, raw):
    B, T, _ = x.shape
    outs = []
    for k in KERNEL_SIZES:
        W = raw[f"conv{k}_w"]
        lp = (k - 1) // 2
        rp = (k - 1) - lp
        xp = jnp.pad(x, ((0, 0), (lp, rp), (0, 0)))
        y = jnp.zeros((B, T, N_FILTERS), jnp.float32)
        for j in range(k):
            y = y + jnp.einsum("bte,fe->btf", xp[:, j:j + T, :], W[:, :, j],
                               precision=jax.lax.Precision.HIGHEST)
        y = y + raw[f"conv{k}_b"]
        y = jax.nn.gelu(y, approximate=False)
        scale = raw[f"bn{k}_gamma"] / jnp.sqrt(raw[f"bn{k}_var"] + BN_EPS)
        shift = raw[f"bn{k}_beta"] - raw[f"bn{k}_mean"] * scale
        outs.append(y * scale + shift)
    cat = jnp.concatenate(outs, axis=-1)
    return jnp.einsum("btf,hf->bth", cat, raw["proj_w"],
                      precision=jax.lax.Precision.HIGHEST) + raw["proj_b"]


if __name__ == "__main__":
    B, T, E, H = 2, 16, 4, 32          # batch, time bins, n_electrodes, hidden_dim
    key = jax.random.PRNGKey(0)
    key, kx = jax.random.split(key)
    x = jax.random.normal(kx, (B, T, E), jnp.float32)

    raw = init_raw_params(key, E, H)
    ref = reference(x, raw)

    # Fast path (per perf review): bf16 streamed operands, f32 accumulation.
    # bf16 rounding of x / conv / projection weights bounds errors to the ~1%
    # relative class, hence the widened tolerance vs. the 2e-3 f32 check below.
    packed_bf16 = pack_params(raw, E, H, compute_dtype=jnp.bfloat16)
    out = jax.block_until_ready(binned_ecog_frontend(x, packed_bf16))
    assert out.shape == (B, T, H)
    if not jnp.allclose(out, ref, atol=3e-2, rtol=3e-2):
        max_err = float(jnp.max(jnp.abs(out - ref)))
        raise AssertionError(f"bf16 path mismatch, max abs err = {max_err}")

    # Full-precision path (same kernel, f32 operands) — tight tolerance.
    packed_f32 = pack_params(raw, E, H, compute_dtype=jnp.float32)
    out32 = jax.block_until_ready(binned_ecog_frontend(x, packed_f32))
    if not jnp.allclose(out32, ref, atol=2e-3, rtol=2e-3):
        max_err = float(jnp.max(jnp.abs(out32 - ref)))
        raise AssertionError(f"f32 path mismatch, max abs err = {max_err}")

    print("KERNEL_OK")
</pallas_src>

<mosaic_0001>
module attributes {stable_mosaic.version = 11 : i64} {
  func.func @_frontend_kernel(%arg0: i32, %arg1: i32, %arg2: memref<1x32x4xbf16, #tpu.memory_space<vmem>>, %arg3: memref<10x4x128xbf16, #tpu.memory_space<vmem>>, %arg4: memref<1x128xf32, #tpu.memory_space<vmem>>, %arg5: memref<128x32xbf16, #tpu.memory_space<vmem>>, %arg6: memref<1x32xf32, #tpu.memory_space<vmem>>, %arg7: memref<1x16x32xf32, #tpu.memory_space<vmem>>) attributes {dimension_semantics = [#tpu.dimension_semantics<parallel>, #tpu.dimension_semantics<parallel>], iteration_bounds = array<i64: 2, 1>, scalar_prefetch = 0 : i64, scratch_operands = 0 : i64, tpu.core_type = #tpu.core_type<tc>, window_params = [{transform_indices = @transform_0, window_bounds = array<i64: 1, 32, 4>}, {pipeline_mode = #tpu.pipeline_mode<synchronous>, transform_indices = @transform_1, window_bounds = array<i64: 10, 4, 128>}, {pipeline_mode = #tpu.pipeline_mode<synchronous>, transform_indices = @transform_2, window_bounds = array<i64: 1, 128>}, {pipeline_mode = #tpu.pipeline_mode<synchronous>, transform_indices = @transform_3, window_bounds = array<i64: 128, 32>}, {pipeline_mode = #tpu.pipeline_mode<synchronous>, transform_indices = @transform_4, window_bounds = array<i64: 1, 32>}, {transform_indices = @transform_5, window_bounds = array<i64: 1, 16, 32>}]} {
    %c16_i32 = arith.constant 16 : i32
    %0 = arith.muli %arg1, %c16_i32 : i32
    %1 = tpu.assume_multiple %0, 8 : i32
    %c0 = arith.constant 0 : index
    %2 = arith.index_cast %1 : i32 to index
    %c0_0 = arith.constant 0 : index
    %3 = vector.load %arg2[%c0, %2, %c0_0] : memref<1x32x4xbf16, #tpu.memory_space<vmem>>, vector<1x32x4xbf16>
    %4 = vector.shape_cast %3 : vector<1x32x4xbf16> to vector<32x4xbf16>
    %5 = vector.extract_strided_slice %4 {offsets = [0, 0], sizes = [16, 4], strides = [1, 1]} : vector<32x4xbf16> to vector<16x4xbf16>
    %c0_1 = arith.constant 0 : index
    %c0_2 = arith.constant 0 : index
    %c0_3 = arith.constant 0 : index
    %6 = vector.load %arg3[%c0_1, %c0_2, %c0_3] : memref<10x4x128xbf16, #tpu.memory_space<vmem>>, vector<1x4x128xbf16>
    %7 = vector.shape_cast %6 : vector<1x4x128xbf16> to vector<4x128xbf16>
    %cst = arith.constant dense<0.000000e+00> : vector<16x128xf32>
    %8 = tpu.matmul %5, %7, %cst {dimension_numbers = #tpu.dot_dimension_numbers<[1], [0], [0], [1], [0, 0, 1, 1], [], []>} : vector<16x4xbf16>, vector<4x128xbf16>, vector<16x128xf32> -> vector<16x128xf32>
    %9 = vector.extract_strided_slice %4 {offsets = [1, 0], sizes = [16, 4], strides = [1, 1]} : vector<32x4xbf16> to vector<16x4xbf16>
    %c1 = arith.constant 1 : index
    %c0_4 = arith.constant 0 : index
    %c0_5 = arith.constant 0 : index
    %10 = vector.load %arg3[%c1, %c0_4, %c0_5] : memref<10x4x128xbf16, #tpu.memory_space<vmem>>, vector<1x4x128xbf16>
    %11 = vector.shape_cast %10 : vector<1x4x128xbf16> to vector<4x128xbf16>
    %cst_6 = arith.constant dense<0.000000e+00> : vector<16x128xf32>
    %12 = tpu.matmul %9, %11, %cst_6 {dimension_numbers = #tpu.dot_dimension_numbers<[1], [0], [0], [1], [0, 0, 1, 1], [], []>} : vector<16x4xbf16>, vector<4x128xbf16>, vector<16x128xf32> -> vector<16x128xf32>
    %13 = arith.addf %8, %12 : vector<16x128xf32>
    %14 = vector.extract_strided_slice %4 {offsets = [2, 0], sizes = [16, 4], strides = [1, 1]} : vector<32x4xbf16> to vector<16x4xbf16>
    %c2 = arith.constant 2 : index
    %c0_7 = arith.constant 0 : index
    %c0_8 = arith.constant 0 : index
    %15 = vector.load %arg3[%c2, %c0_7, %c0_8] : memref<10x4x128xbf16, #tpu.memory_space<vmem>>, vector<1x4x128xbf16>
    %16 = vector.shape_cast %15 : vector<1x4x128xbf16> to vector<4x128xbf16>
    %cst_9 = arith.constant dense<0.000000e+00> : vector<16x128xf32>
    %17 = tpu.matmul %14, %16, %cst_9 {dimension_numbers = #tpu.dot_dimension_numbers<[1], [0], [0], [1], [0, 0, 1, 1], [], []>} : vector<16x4xbf16>, vector<4x128xbf16>, vector<16x128xf32> -> vector<16x128xf32>
    %18 = arith.addf %13, %17 : vector<16x128xf32>
    %19 = vector.extract_strided_slice %4 {offsets = [3, 0], sizes = [16, 4], strides = [1, 1]} : vector<32x4xbf16> to vector<16x4xbf16>
    %c3 = arith.constant 3 : index
    %c0_10 = arith.constant 0 : index
    %c0_11 = arith.constant 0 : index
    %20 = vector.load %arg3[%c3, %c0_10, %c0_11] : memref<10x4x128xbf16, #tpu.memory_space<vmem>>, vector<1x4x128xbf16>
    %21 = vector.shape_cast %20 : vector<1x4x128xbf16> to vector<4x128xbf16>
    %cst_12 = arith.constant dense<0.000000e+00> : vector<16x128xf32>
    %22 = tpu.matmul %19, %21, %cst_12 {dimension_numbers = #tpu.dot_dimension_numbers<[1], [0], [0], [1], [0, 0, 1, 1], [], []>} : vector<16x4xbf16>, vector<4x128xbf16>, vector<16x128xf32> -> vector<16x128xf32>
    %23 = arith.addf %18, %22 : vector<16x128xf32>
    %24 = vector.extract_strided_slice %4 {offsets = [4, 0], sizes = [16, 4], strides = [1, 1]} : vector<32x4xbf16> to vector<16x4xbf16>
    %c4 = arith.constant 4 : index
    %c0_13 = arith.constant 0 : index
    %c0_14 = arith.constant 0 : index
    %25 = vector.load %arg3[%c4, %c0_13, %c0_14] : memref<10x4x128xbf16, #tpu.memory_space<vmem>>, vector<1x4x128xbf16>
    %26 = vector.shape_cast %25 : vector<1x4x128xbf16> to vector<4x128xbf16>
    %cst_15 = arith.constant dense<0.000000e+00> : vector<16x128xf32>
    %27 = tpu.matmul %24, %26, %cst_15 {dimension_numbers = #tpu.dot_dimension_numbers<[1], [0], [0], [1], [0, 0, 1, 1], [], []>} : vector<16x4xbf16>, vector<4x128xbf16>, vector<16x128xf32> -> vector<16x128xf32>
    %28 = arith.addf %23, %27 : vector<16x128xf32>
    %29 = vector.extract_strided_slice %4 {offsets = [5, 0], sizes = [16, 4], strides = [1, 1]} : vector<32x4xbf16> to vector<16x4xbf16>
    %c5 = arith.constant 5 : index
    %c0_16 = arith.constant 0 : index
    %c0_17 = arith.constant 0 : index
    %30 = vector.load %arg3[%c5, %c0_16, %c0_17] : memref<10x4x128xbf16, #tpu.memory_space<vmem>>, vector<1x4x128xbf16>
    %31 = vector.shape_cast %30 : vector<1x4x128xbf16> to vector<4x128xbf16>
    %cst_18 = arith.constant dense<0.000000e+00> : vector<16x128xf32>
    %32 = tpu.matmul %29, %31, %cst_18 {dimension_numbers = #tpu.dot_dimension_numbers<[1], [0], [0], [1], [0, 0, 1, 1], [], []>} : vector<16x4xbf16>, vector<4x128xbf16>, vector<16x128xf32> -> vector<16x128xf32>
    %33 = arith.addf %28, %32 : vector<16x128xf32>
    %34 = vector.extract_strided_slice %4 {offsets = [6, 0], sizes = [16, 4], strides = [1, 1]} : vector<32x4xbf16> to vector<16x4xbf16>
    %c6 = arith.constant 6 : index
    %c0_19 = arith.constant 0 : index
    %c0_20 = arith.constant 0 : index
    %35 = vector.load %arg3[%c6, %c0_19, %c0_20] : memref<10x4x128xbf16, #tpu.memory_space<vmem>>, vector<1x4x128xbf16>
    %36 = vector.shape_cast %35 : vector<1x4x128xbf16> to vector<4x128xbf16>
    %cst_21 = arith.constant dense<0.000000e+00> : vector<16x128xf32>
    %37 = tpu.matmul %34, %36, %cst_21 {dimension_numbers = #tpu.dot_dimension_numbers<[1], [0], [0], [1], [0, 0, 1, 1], [], []>} : vector<16x4xbf16>, vector<4x128xbf16>, vector<16x128xf32> -> vector<16x128xf32>
    %38 = arith.addf %33, %37 : vector<16x128xf32>
    %39 = vector.extract_strided_slice %4 {offsets = [7, 0], sizes = [16, 4], strides = [1, 1]} : vector<32x4xbf16> to vector<16x4xbf16>
    %c7 = arith.constant 7 : index
    %c0_22 = arith.constant 0 : index
    %c0_23 = arith.constant 0 : index
    %40 = vector.load %arg3[%c7, %c0_22, %c0_23] : memref<10x4x128xbf16, #tpu.memory_space<vmem>>, vector<1x4x128xbf16>
    %41 = vector.shape_cast %40 : vector<1x4x128xbf16> to vector<4x128xbf16>
    %cst_24 = arith.constant dense<0.000000e+00> : vector<16x128xf32>
    %42 = tpu.matmul %39, %41, %cst_24 {dimension_numbers = #tpu.dot_dimension_numbers<[1], [0], [0], [1], [0, 0, 1, 1], [], []>} : vector<16x4xbf16>, vector<4x128xbf16>, vector<16x128xf32> -> vector<16x128xf32>
    %43 = arith.addf %38, %42 : vector<16x128xf32>
    %44 = vector.extract_strided_slice %4 {offsets = [8, 0], sizes = [16, 4], strides = [1, 1]} : vector<32x4xbf16> to vector<16x4xbf16>
    %c8 = arith.constant 8 : index
    %c0_25 = arith.constant 0 : index
    %c0_26 = arith.constant 0 : index
    %45 = vector.load %arg3[%c8, %c0_25, %c0_26] : memref<10x4x128xbf16, #tpu.memory_space<vmem>>, vector<1x4x128xbf16>
    %46 = vector.shape_cast %45 : vector<1x4x128xbf16> to vector<4x128xbf16>
    %cst_27 = arith.constant dense<0.000000e+00> : vector<16x128xf32>
    %47 = tpu.matmul %44, %46, %cst_27 {dimension_numbers = #tpu.dot_dimension_numbers<[1], [0], [0], [1], [0, 0, 1, 1], [], []>} : vector<16x4xbf16>, vector<4x128xbf16>, vector<16x128xf32> -> vector<16x128xf32>
    %48 = arith.addf %43, %47 : vector<16x128xf32>
    %49 = vector.extract_strided_slice %4 {offsets = [9, 0], sizes = [16, 4], strides = [1, 1]} : vector<32x4xbf16> to vector<16x4xbf16>
    %c9 = arith.constant 9 : index
    %c0_28 = arith.constant 0 : index
    %c0_29 = arith.constant 0 : index
    %50 = vector.load %arg3[%c9, %c0_28, %c0_29] : memref<10x4x128xbf16, #tpu.memory_space<vmem>>, vector<1x4x128xbf16>
    %51 = vector.shape_cast %50 : vector<1x4x128xbf16> to vector<4x128xbf16>
    %cst_30 = arith.constant dense<0.000000e+00> : vector<16x128xf32>
    %52 = tpu.matmul %49, %51, %cst_30 {dimension_numbers = #tpu.dot_dimension_numbers<[1], [0], [0], [1], [0, 0, 1, 1], [], []>} : vector<16x4xbf16>, vector<4x128xbf16>, vector<16x128xf32> -> vector<16x128xf32>
    %53 = arith.addf %48, %52 : vector<16x128xf32>
    %c0_31 = arith.constant 0 : index
    %c0_32 = arith.constant 0 : index
    %54 = vector.load %arg4[%c0_31, %c0_32] : memref<1x128xf32, #tpu.memory_space<vmem>>, vector<1x128xf32>
    %55 = vector.broadcast %54 : vector<1x128xf32> to vector<16x128xf32>
    %56 = arith.addf %53, %55 : vector<16x128xf32>
    %cst_33 = arith.constant 5.000000e-01 : f32
    %57 = vector.broadcast %cst_33 : f32 to vector<16x128xf32>
    %58 = arith.mulf %57, %56 : vector<16x128xf32>
    %cst_34 = arith.constant 0.707106769 : f32
    %59 = vector.broadcast %cst_34 : f32 to vector<16x128xf32>
    %60 = arith.mulf %56, %59 : vector<16x128xf32>
    %cst_35 = arith.constant -3.8325069 : f32
    %cst_36 = arith.constant 3.8325069 : f32
    %61 = vector.broadcast %cst_35 : f32 to vector<16x128xf32>
    %62 = arith.maximumf %61, %60 : vector<16x128xf32>
    %63 = vector.broadcast %cst_36 : f32 to vector<16x128xf32>
    %64 = arith.minimumf %63, %62 : vector<16x128xf32>
    %65 = arith.mulf %64, %64 : vector<16x128xf32>
    %cst_37 = arith.constant 2.29050653E-4 : f32
    %66 = vector.broadcast %cst_37 : f32 to vector<16x128xf32>
    %67 = arith.mulf %66, %65 : vector<16x128xf32>
    %cst_38 = arith.constant 0.00340829091 : f32
    %68 = vector.broadcast %cst_38 : f32 to vector<16x128xf32>
    %69 = arith.addf %67, %68 : vector<16x128xf32>
    %70 = arith.mulf %69, %65 : vector<16x128xf32>
    %cst_39 = arith.constant 0.0509556942 : f32
    %71 = vector.broadcast %cst_39 : f32 to vector<16x128xf32>
    %72 = arith.addf %70, %71 : vector<16x128xf32>
    %73 = arith.mulf %72, %65 : vector<16x128xf32>
    %cst_40 = arith.constant 0.185208321 : f32
    %74 = vector.broadcast %cst_40 : f32 to vector<16x128xf32>
    %75 = arith.addf %73, %74 : vector<16x128xf32>
    %76 = arith.mulf %75, %65 : vector<16x128xf32>
    %cst_41 = arith.constant 1.12837911 : f32
    %77 = vector.broadcast %cst_41 : f32 to vector<16x128xf32>
    %78 = arith.addf %76, %77 : vector<16x128xf32>
    %cst_42 = arith.constant -1.17916031E-7 : f32
    %79 = vector.broadcast %cst_42 : f32 to vector<16x128xf32>
    %80 = arith.mulf %79, %65 : vector<16x128xf32>
    %cst_43 = arith.constant 2.35479656E-5 : f32
    %81 = vector.broadcast %cst_43 : f32 to vector<16x128xf32>
    %82 = arith.addf %80, %81 : vector<16x128xf32>
    %83 = arith.mulf %82, %65 : vector<16x128xf32>
    %cst_44 = arith.constant 0.00101796258 : f32
    %84 = vector.broadcast %cst_44 : f32 to vector<16x128xf32>
    %85 = arith.addf %83, %84 : vector<16x128xf32>
    %86 = arith.mulf %85, %65 : vector<16x128xf32>
    %cst_45 = arith.constant 0.0140704699 : f32
    %87 = vector.broadcast %cst_45 : f32 to vector<16x128xf32>
    %88 = arith.addf %86, %87 : vector<16x128xf32>
    %89 = arith.mulf %88, %65 : vector<16x128xf32>
    %cst_46 = arith.constant 0.110985048 : f32
    %90 = vector.broadcast %cst_46 : f32 to vector<16x128xf32>
    %91 = arith.addf %89, %90 : vector<16x128xf32>
    %92 = arith.mulf %91, %65 : vector<16x128xf32>
    %cst_47 = arith.constant 0.497469246 : f32
    %93 = vector.broadcast %cst_47 : f32 to vector<16x128xf32>
    %94 = arith.addf %92, %93 : vector<16x128xf32>
    %95 = arith.mulf %94, %65 : vector<16x128xf32>
    %cst_48 = arith.constant 1.000000e+00 : f32
    %96 = vector.broadcast %cst_48 : f32 to vector<16x128xf32>
    %97 = arith.addf %95, %96 : vector<16x128xf32>
    %98 = arith.mulf %64, %78 : vector<16x128xf32>
    %99 = tpu.reciprocal %97 {approx = true} : vector<16x128xf32> -> vector<16x128xf32>
    %100 = arith.mulf %98, %99 : vector<16x128xf32>
    %cst_49 = arith.constant 1.000000e+00 : f32
    %101 = vector.broadcast %cst_49 : f32 to vector<16x128xf32>
    %102 = arith.addf %101, %100 : vector<16x128xf32>
    %103 = arith.mulf %58, %102 : vector<16x128xf32>
    %104 = arith.truncf %103 : vector<16x128xf32> to vector<16x128xbf16>
    %c0_50 = arith.constant 0 : index
    %c0_51 = arith.constant 0 : index
    %105 = vector.load %arg5[%c0_50, %c0_51] : memref<128x32xbf16, #tpu.memory_space<vmem>>, vector<128x32xbf16>
    %cst_52 = arith.constant dense<0.000000e+00> : vector<16x32xf32>
    %106 = tpu.matmul %104, %105, %cst_52 {dimension_numbers = #tpu.dot_dimension_numbers<[1], [0], [0], [1], [0, 0, 1, 1], [], []>} : vector<16x128xbf16>, vector<128x32xbf16>, vector<16x32xf32> -> vector<16x32xf32>
    %c0_53 = arith.constant 0 : index
    %c0_54 = arith.constant 0 : index
    %107 = vector.load %arg6[%c0_53, %c0_54] : memref<1x32xf32, #tpu.memory_space<vmem>>, vector<1x32xf32>
    %108 = vector.broadcast %107 : vector<1x32xf32> to vector<16x32xf32>
    %109 = arith.addf %106, %108 : vector<16x32xf32>
    %c0_55 = arith.constant 0 : index
    %c0_56 = arith.constant 0 : index
    %c0_57 = arith.constant 0 : index
    %110 = vector.load %arg7[%c0_55, %c0_56, %c0_57] : memref<1x16x32xf32, #tpu.memory_space<vmem>>, vector<1x16x32xf32>
    %111 = vector.shape_cast %110 : vector<1x16x32xf32> to vector<16x32xf32>
    %112 = vector.shape_cast %109 : vector<16x32xf32> to vector<1x16x32xf32>
    tpu.vector_store %arg7[%c0_55, %c0_56, %c0_57], %112 {strides = array<i32>} : memref<1x16x32xf32, #tpu.memory_space<vmem>>, vector<1x16x32xf32>,
    return
  }
  func.func @transform_0(%arg0: i32, %arg1: i32) -> (i32, i32, i32) {
    %c0_i32 = arith.constant 0 : i32
    %c0_i32_0 = arith.constant 0 : i32
    %c0_i32_1 = arith.constant 0 : i32
    return %arg0, %c0_i32, %c0_i32_0 : i32, i32, i32
  }
  func.func @transform_1(%arg0: i32, %arg1: i32) -> (i32, i32, i32) {
    %c0_i32 = arith.constant 0 : i32
    %c0_i32_0 = arith.constant 0 : i32
    %c0_i32_1 = arith.constant 0 : i32
    %c0_i32_2 = arith.constant 0 : i32
    return %c0_i32, %c0_i32_0, %c0_i32_1 : i32, i32, i32
  }
  func.func @transform_2(%arg0: i32, %arg1: i32) -> (i32, i32) {
    %c0_i32 = arith.constant 0 : i32
    %c0_i32_0 = arith.constant 0 : i32
    %c0_i32_1 = arith.constant 0 : i32
    return %c0_i32, %c0_i32_0 : i32, i32
  }
  func.func @transform_3(%arg0: i32, %arg1: i32) -> (i32, i32) {
    %c0_i32 = arith.constant 0 : i32
    %c0_i32_0 = arith.constant 0 : i32
    %c0_i32_1 = arith.constant 0 : i32
    return %c0_i32, %c0_i32_0 : i32, i32
  }
  func.func @transform_4(%arg0: i32, %arg1: i32) -> (i32, i32) {
    %c0_i32 = arith.constant 0 : i32
    %c0_i32_0 = arith.constant 0 : i32
    %c0_i32_1 = arith.constant 0 : i32
    return %c0_i32, %c0_i32_0 : i32, i32
  }
  func.func @transform_5(%arg0: i32, %arg1: i32) -> (i32, i32, i32) {
    %c0_i32 = arith.constant 0 : i32
    %c0_i32_0 = arith.constant 0 : i32
    return %arg0, %arg1, %c0_i32 : i32, i32, i32
  }
}

</mosaic_0001>

<llo_original>
// kernel: tpu_custom_call.1
$region0: #{tpu_custom_call.1}
  #allocation0 [shape = 'u32[]', space=smem, size = 0x4, offset = 0x4, fixed_abs, tag = 'smem constant byte address 0x4 - core index']
  #allocation1 [shape = 'u32[144,128]{1,0:T(1,128)}', space=vmem, size = 0x12000, scoped, tag = 'internal scratch']
  %s0 = inlined_call_operand.vmem [shape: bf16[2,32,4], index: 0, kind: input, shape index: {}]
  %s1 = inlined_call_operand.vmem [shape: bf16[10,4,128], index: 1, kind: input, shape index: {}]
  %s2 = inlined_call_operand.vmem [shape: f32[1,128], index: 2, kind: input, shape index: {}]
  %s3 = inlined_call_operand.vmem [shape: bf16[128,32], index: 3, kind: input, shape index: {}]
  %s4 = inlined_call_operand.vmem [shape: f32[1,32], index: 4, kind: input, shape index: {}]
  %s5 = inlined_call_operand.hbm [shape: f32[2,16,32], index: 5, kind: output, shape index: {}]
  %s6 = sld [smem:[#allocation0]]
  $region53: #{tpu_custom_call.1} parent=0
    _
  %s8 = ssub.s32 1, %s6
  %s9 = scalar_select 0, %s8, %s6
  $region1: #{tpu_custom_call.1} parent=0
    #allocation2 [shape = 'u8[16384]{0}', space=vmem, size = 0x4000, scoped, tag = 'output window, operand 0']
    #allocation3 [shape = 's32[2]{0}', space=sflag, size = 0x8, scoped, tag = 'scoped memory for tpu_custom_call.1']
    %10 = vsyncpa [#allocation3], 0
    %s11 = scalar_lea.sflag [#allocation3], 1
    %12 = vsyncpa %s11, 0
    loop: start=0, step=1, limit=4
    $region2: #{tpu_custom_call.1} parent=1 // loop_pre_header
      _
    $region3: #{tpu_custom_call.1} parent=1 // loop_header
      %s14 = sphi 0, %s18
      %p15 = scmp.ge.s32.totalorder %s14, 4
      %s21 = sphi 0, %s33
      %s22 = sphi 0, %s29
      %s23 = sphi 0, %s21
      %s24 = sphi 0, %s22
      %s25 = sphi 0, %s23
      %s26 = sphi 0, %s24
      %s36 = sphi 0, %s38
      %s39 = sphi 0, %s36
      %s40 = sphi 0, %s39
      %s56 = sphi 0, %s40
      %s60 = sphi 0, %s60
      %s62 = sphi 0, %s60
      %s63 = sphi 0, %s62
      %s77 = sphi 0, %s63
      %s81 = sphi 0, %s81
      %s83 = sphi 0, %s81
      %s84 = sphi 0, %s83
      %s98 = sphi 0, %s84
      %s102 = sphi 0, %s102
      %s104 = sphi 0, %s102
      %s105 = sphi 0, %s104
      %s119 = sphi 0, %s105
      %s123 = sphi 0, %s123
      %s125 = sphi 0, %s123
      %s126 = sphi 0, %s125
      %s140 = sphi 0, %s126
      %s148 = sphi 0, %s150
      %s151 = sphi 0, %s148
      %s152 = sphi 0, %s151
      %s168 = sphi 0, %s152
    $region4: #{tpu_custom_call.1} parent=1 // loop_header_branch
      %17 = sbr.rel (%p15) target = $region8
    $region5: #{tpu_custom_call.1} parent=1 // loop_body
      %s19 = ssub.s32 %s14, 1
      %s20 = ssub.s32 %s14, 2
      %s27 = sadd.s32 1, %s22
      %p28 = scmp.ge.s32.totalorder %s27, 1
      %s29 = scalar_select %p28, 0, %s27
      %s30 = sadd.s32 1, %s21
      %s31 = scalar_select %p28, %s30, %s21
      %p32 = scmp.ge.s32.totalorder %s31, 2
      %s33 = scalar_select %p32, 0, %s31
      %s34 = ssub.s32 %s21, %s33
      %p35 = scmp.eq.s32.totalorder %s34, 0
      %s37 = sadd.s32 %s36, 1
      %s38 = scalar_select %p35, %s36, %s37
      %p41 = pneg %p35
      %p42 = scmp.eq.s32.totalorder %s14, 1
      %p43 = por %p41, %p42
      %p44 = scmp.ne.s32.totalorder %s36, %s39
      %p45 = scmp.eq.s32.totalorder %s14, 0
      %p46 = por %p44, %p45
      %p47 = scmp.ne.s32.totalorder %s36, %s39
      %p48 = scmp.eq.s32.totalorder %s19, 1
      %p49 = por %p47, %p48
      %p50 = scmp.ne.s32.totalorder %s39, %s40
      %p51 = scmp.eq.s32.totalorder %s19, 0
      %p52 = por %p50, %p51
      %p53 = scmp.ne.s32.totalorder %s39, %s40
      %p54 = scmp.eq.s32.totalorder %s20, 1
      %p55 = por %p53, %p54
      %p57 = scmp.ne.s32.totalorder %s40, %s56
      %p58 = scmp.eq.s32.totalorder %s20, 0
      %p59 = por %p57, %p58
      %s61 = sadd.s32 %s60, 1
      %p64 = scmp.eq.s32.totalorder %s14, 1
      %p65 = scmp.ne.s32.totalorder %s60, %s62
      %p66 = scmp.eq.s32.totalorder %s14, 0
      %p67 = por %p65, %p66
      %p68 = scmp.ne.s32.totalorder %s60, %s62
      %p69 = scmp.eq.s32.totalorder %s19, 1
      %p70 = por %p68, %p69
      %p71 = scmp.ne.s32.totalorder %s62, %s63
      %p72 = scmp.eq.s32.totalorder %s19, 0
      %p73 = por %p71, %p72
      %p74 = scmp.ne.s32.totalorder %s62, %s63
      %p75 = scmp.eq.s32.totalorder %s20, 1
      %p76 = por %p74, %p75
      %p78 = scmp.ne.s32.totalorder %s63, %s77
      %p79 = scmp.eq.s32.totalorder %s20, 0
      %p80 = por %p78, %p79
      %s82 = sadd.s32 %s81, 1
      %p85 = scmp.eq.s32.totalorder %s14, 1
      %p86 = scmp.ne.s32.totalorder %s81, %s83
      %p87 = scmp.eq.s32.totalorder %s14, 0
      %p88 = por %p86, %p87
      %p89 = scmp.ne.s32.totalorder %s81, %s83
      %p90 = scmp.eq.s32.totalorder %s19, 1
      %p91 = por %p89, %p90
      %p92 = scmp.ne.s32.totalorder %s83, %s84
      %p93 = scmp.eq.s32.totalorder %s19, 0
      %p94 = por %p92, %p93
      %p95 = scmp.ne.s32.totalorder %s83, %s84
      %p96 = scmp.eq.s32.totalorder %s20, 1
      %p97 = por %p95, %p96
      %p99 = scmp.ne.s32.totalorder %s84, %s98
      %p100 = scmp.eq.s32.totalorder %s20, 0
      %p101 = por %p99, %p100
      %s103 = sadd.s32 %s102, 1
      %p106 = scmp.eq.s32.totalorder %s14, 1
      %p107 = scmp.ne.s32.totalorder %s102, %s104
      %p108 = scmp.eq.s32.totalorder %s14, 0
      %p109 = por %p107, %p108
      %p110 = scmp.ne.s32.totalorder %s102, %s104
      %p111 = scmp.eq.s32.totalorder %s19, 1
      %p112 = por %p110, %p111
      %p113 = scmp.ne.s32.totalorder %s104, %s105
      %p114 = scmp.eq.s32.totalorder %s19, 0
      %p115 = por %p113, %p114
      %p116 = scmp.ne.s32.totalorder %s104, %s105
      %p117 = scmp.eq.s32.totalorder %s20, 1
      %p118 = por %p116, %p117
      %p120 = scmp.ne.s32.totalorder %s105, %s119
      %p121 = scmp.eq.s32.totalorder %s20, 0
      %p122 = por %p120, %p121
      %s124 = sadd.s32 %s123, 1
      %p127 = scmp.eq.s32.totalorder %s14, 1
      %p128 = scmp.ne.s32.totalorder %s123, %s125
      %p129 = scmp.eq.s32.totalorder %s14, 0
      %p130 = por %p128, %p129
      %p131 = scmp.ne.s32.totalorder %s123, %s125
      %p132 = scmp.eq.s32.totalorder %s19, 1
      %p133 = por %p131, %p132
      %p134 = scmp.ne.s32.totalorder %s125, %s126
      %p135 = scmp.eq.s32.totalorder %s19, 0
      %p136 = por %p134, %p135
      %p137 = scmp.ne.s32.totalorder %s125, %s126
      %p138 = scmp.eq.s32.totalorder %s20, 1
      %p139 = por %p137, %p138
      %p141 = scmp.ne.s32.totalorder %s126, %s140
      %p142 = scmp.eq.s32.totalorder %s20, 0
      %p143 = por %p141, %p142
      %s144 = ssub.s32 %s21, %s33
      %s145 = ssub.s32 %s22, %s29
      %s146 = sor.u32 %s144, %s145
      %p147 = scmp.eq.s32.totalorder %s146, 0
      %s149 = sadd.s32 %s148, 1
      %s150 = scalar_select %p147, %s148, %s149
      %p153 = pneg %p147
      %p154 = scmp.eq.s32.totalorder %s14, 1
      %p155 = por %p153, %p154
      %p156 = scmp.ne.s32.totalorder %s148, %s151
      %p157 = scmp.eq.s32.totalorder %s14, 0
      %p158 = por %p156, %p157
      %p159 = scmp.ne.s32.totalorder %s148, %s151
      %p160 = scmp.eq.s32.totalorder %s19, 1
      %p161 = por %p159, %p160
      %p162 = scmp.ne.s32.totalorder %s151, %s152
      %p163 = scmp.eq.s32.totalorder %s19, 0
      %p164 = por %p162, %p163
      %p165 = scmp.ne.s32.totalorder %s151, %s152
      %p166 = scmp.eq.s32.totalorder %s20, 1
      %p167 = por %p165, %p166
      %p169 = scmp.ne.s32.totalorder %s152, %s168
      %p170 = scmp.eq.s32.totalorder %s20, 0
      %p171 = por %p169, %p170
      %p172 = scmp.le.s32.totalorder 1, %s14
      %p173 = scmp.lt.s32.totalorder %s14, 3
      %p174 = pnand %p172, %p173
      %p175 = pneg %p174
      // Predicated region
      $region9: #{tpu_custom_call.1} parent=5 // pred_check
        _
      $region10: #{tpu_custom_call.1} parent=5 // pred_check_branch
        %177 = sbr.rel (%p174) target = $region12
      $region11: #{tpu_custom_call.1} parent=5 // pred_region
        %s178 = ssub.s32 %s14, 1
        // Predicated region
        $region13: #{tpu_custom_call.1} parent=11 // pred_check
          %p179 = pneg %p73
        $region14: #{tpu_custom_call.1} parent=11 // pred_check_branch
          %181 = sbr.rel (%p179) target = $region16
        $region15: #{tpu_custom_call.1} parent=11 // pred_region
          _
        $region16: #{tpu_custom_call.1} parent=11 // pred_fallthru
          _
        // Predicated region
        $region17: #{tpu_custom_call.1} parent=11 // pred_check
          %p182 = pneg %p94
        $region18: #{tpu_custom_call.1} parent=11 // pred_check_branch
          %184 = sbr.rel (%p182) target = $region20
        $region19: #{tpu_custom_call.1} parent=11 // pred_region
          _
        $region20: #{tpu_custom_call.1} parent=11 // pred_fallthru
          _
        // Predicated region
        $region21: #{tpu_custom_call.1} parent=11 // pred_check
          %p185 = pneg %p115
        $region22: #{tpu_custom_call.1} parent=11 // pred_check_branch
          %187 = sbr.rel (%p185) target = $region24
        $region23: #{tpu_custom_call.1} parent=11 // pred_region
          _
        $region24: #{tpu_custom_call.1} parent=11 // pred_fallthru
          _
        // Predicated region
        $region25: #{tpu_custom_call.1} parent=11 // pred_check
          %p188 = pneg %p136
        $region26: #{tpu_custom_call.1} parent=11 // pred_check_branch
          %190 = sbr.rel (%p188) target = $region28
        $region27: #{tpu_custom_call.1} parent=11 // pred_region
          _
        $region28: #{tpu_custom_call.1} parent=11 // pred_fallthru
          _
      $region12: #{tpu_custom_call.1} parent=5 // pred_fallthru
        _
      %p191 = scmp.lt.s32.totalorder %s14, 2
      // Predicated region
      $region29: #{tpu_custom_call.1} parent=5 // pred_check
        %p192 = pneg %p191
      $region30: #{tpu_custom_call.1} parent=5 // pred_check_branch
        %194 = sbr.rel (%p192) target = $region32
      $region31: #{tpu_custom_call.1} parent=5 // pred_region
        // Predicated region
        $region33: #{tpu_custom_call.1} parent=31 // pred_check
          %p195 = pneg %p46
        $region34: #{tpu_custom_call.1} parent=31 // pred_check_branch
          %197 = sbr.rel (%p195) target = $region36
        $region35: #{tpu_custom_call.1} parent=31 // pred_region
          %p198 = scmp.lt.s32.totalorder %s21, 1
          %s199 = scalar_select %p198, %s21, 1
          %s200 = smul.addr %s199, 4
          %s201 = smul.addr %s200, 4
          %s202 = scalar_lea.vmem %s0, %s201
        $region36: #{tpu_custom_call.1} parent=31 // pred_fallthru
          _
      $region32: #{tpu_custom_call.1} parent=5 // pred_fallthru
        _
      %p203 = scmp.le.s32.totalorder 1, %s14
      %p204 = scmp.lt.s32.totalorder %s14, 3
      %p205 = pnand %p203, %p204
      %p206 = pneg %p205
      // Predicated region
      $region37: #{tpu_custom_call.1} parent=5 // pred_check
        _
      $region38: #{tpu_custom_call.1} parent=5 // pred_check_branch
        %208 = sbr.rel (%p205) target = $region40
      $region39: #{tpu_custom_call.1} parent=5 // pred_region
        %s209 = ssub.s32 %s14, 1
        %p210 = scmp.lt.s32.totalorder %s23, 1
        %s211 = scalar_select %p210, %s23, 1
        %s212 = smul.addr %s211, 4
        %s213 = smul.addr %s212, 4
        %s214 = scalar_lea.vmem %s0, %s213
        %p215 = pneg %p52
        %p216 = pneg %p49
        %p217 = pneg %p73
        %p218 = pneg %p70
        %p219 = pneg %p94
        %p220 = pneg %p91
        %p221 = pneg %p115
        %p222 = pneg %p112
        %p223 = pneg %p136
        %p224 = pneg %p133
        %p225 = pneg %p164
        %p226 = pneg %p161
        %s227 = sand.u32 %s151, 1
        %s228 = scalar_lea.sflag [#allocation3], %s227
        %s229 = sand.u32 %s151, 1
        %s230 = smul.addr %s229, 16
        %s231 = scalar_lea.vmem [#allocation2], %s230
        %p232 = scmp.lt.s32.totalorder %s23, 1
        %s233 = scalar_select %p232, %s23, 1
        %s234 = smul.addr %s233, 4
        %s235 = smul.addr %s234, 4
        %s236 = scalar_lea.vmem %s0, %s235
        %s237 = smul.u32 2, %s24
        %s239 = smul.u32 %s24, 16
        %s240 = sshra.s32 %s239, 3
        %s241 = sand.u32 %s239, 7
        %s242 = smul.addr %s240, 4
        %s243 = scalar_lea.vmem %s236, %s242
        %v244 = vld [vmem:[%s243] sm:$0xf]
        %v245 = vld [vmem:[%s243 + $0x4] sm:$0xf]
        %v246 = vld [vmem:[%s243 + $0x8] sm:$0xf]
        %v247 = vld [vmem:[%s243 + $0xc] sm:$0xf]
        %v248 = vld [vmem:[%s1] sm:$0x3]
        %s249 = scalar_lea.vmem %s1, 2
        %v250 = vld [vmem:[%s249] sm:$0x3]
        %v254 = vunpack.c.l.b16 %v244
        %v255 = vunpack.c.l.b16 %v245
        %v256 = vunpack.c.l.b16 %v246
        %v257 = vpack.c.b16 %v255, %v254
        %v258 = vpack.c.b16 %v256, %v256
        %vm259 = vsmask.f32 7424
        %v261 = vshrl.u32 %v257, 16
        %v263 = vshll.u32 %v257, 16
        %v265 = vrot.slane %v263, 1
        %v266 = vor.u32 %v261, %v265
        %v268 = vshll.u32 %v258, 16
        %v270 = vrot.slane %v268, 1
        %v271 = vsel %vm259, %v266, %v270
        %vm272 = vcmask 31744
        %v274 = vsel %vm272, %v271, 0
        %vm276 = vcmask 1041408
        %v278 = vsel %vm276, %v250, 0
        %280 = vmatprep.subr.bf16.mxu0 0
        %281 = vmatpush1.bf16.msra.mxu0 %v278
        %282 = vmatprep.subr.bf16.mxu0 0
        %283 = vmatpush1.bf16.msra.mxu0 0
        %284 = vmatprep.subr.bf16.mxu0 0
        %285 = vmatpush1.bf16.msra.mxu0 0
        %286 = vmatprep.subr.bf16.mxu0 0
        %287 = vmatpush1.bf16.msra.mxu0 0
        %288 = vmatprep.subr.bf16.mxu0 0
        %289 = vmatpush1.bf16.msra.mxu0 0
        %290 = vmatprep.subr.bf16.mxu0 0
        %291 = vmatpush1.bf16.msra.mxu0 0
        %292 = vmatprep.subr.bf16.mxu0 0
        %293 = vmatpush1.bf16.msra.mxu0 0
        %294 = vmatprep.subr.bf16.mxu0 0
        %295 = vmatpush1.bf16.msra.mxu0 0
        %296 = vmatprep.subr.bf16.mxu0 0
        %297 = vmatpush1.bf16.msra.mxu0 0
        %298 = vmatprep.subr.bf16.mxu0 0
        %299 = vmatpush1.bf16.msra.mxu0 0
        %300 = vmatprep.subr.bf16.mxu0 0
        %301 = vmatpush1.bf16.msra.mxu0 0
        %302 = vmatprep.subr.bf16.mxu0 0
        %303 = vmatpush1.bf16.msra.mxu0 0
        %304 = vmatprep.subr.bf16.mxu0 0
        %305 = vmatpush1.bf16.msra.mxu0 0
        %306 = vmatprep.subr.bf16.mxu0 0
        %307 = vmatpush1.bf16.msra.mxu0 0
        %308 = vmatprep.subr.bf16.mxu0 0
        %309 = vmatpush1.bf16.msra.mxu0 0
        %310 = vmatprep.subr.bf16.mxu0 0
        %311 = vmatpush1.bf16.msra.mxu0 0
        %312 = vmatprep.mubr.bf16.mxu0 0
        %313 = vmatmul.mubr.bf16.gmra.mrb[0].mxu0 %v274
        %v314 = vpop.f32.mrb[0].mxu0
        %v315 = vadd.f32 0.0, %v314
        %v316 = vpop.f32.mrb[0].mxu0
        %v317 = vpop.f32.mrb[0].mxu0
        %v318 = vadd.f32 0.0, %v317
        %v319 = vpop.f32.mrb[0].mxu0
        %320 = vdwg.mxu0
        %v321 = vsel %vm272, %v257, 0
        %v324 = vsel %vm276, %v248, 0
        %326 = vmatprep.subr.bf16.mxu0 0
        %327 = vmatpush1.bf16.msra.mxu0 %v324
        %328 = vmatprep.subr.bf16.mxu0 0
        %329 = vmatpush1.bf16.msra.mxu0 0
        %330 = vmatprep.subr.bf16.mxu0 0
        %331 = vmatpush1.bf16.msra.mxu0 0
        %332 = vmatprep.subr.bf16.mxu0 0
        %333 = vmatpush1.bf16.msra.mxu0 0
        %334 = vmatprep.subr.bf16.mxu0 0
        %335 = vmatpush1.bf16.msra.mxu0 0
        %336 = vmatprep.subr.bf16.mxu0 0
        %337 = vmatpush1.bf16.msra.mxu0 0
        %338 = vmatprep.subr.bf16.mxu0 0
        %339 = vmatpush1.bf16.msra.mxu0 0
        %340 = vmatprep.subr.bf16.mxu0 0
        %341 = vmatpush1.bf16.msra.mxu0 0
        %342 = vmatprep.subr.bf16.mxu0 0
        %343 = vmatpush1.bf16.msra.mxu0 0
        %344 = vmatprep.subr.bf16.mxu0 0
        %345 = vmatpush1.bf16.msra.mxu0 0
        %346 = vmatprep.subr.bf16.mxu0 0
        %347 = vmatpush1.bf16.msra.mxu0 0
        %348 = vmatprep.subr.bf16.mxu0 0
        %349 = vmatpush1.bf16.msra.mxu0 0
        %350 = vmatprep.subr.bf16.mxu0 0
        %351 = vmatpush1.bf16.msra.mxu0 0
        %352 = vmatprep.subr.bf16.mxu0 0
        %353 = vmatpush1.bf16.msra.mxu0 0
        %354 = vmatprep.subr.bf16.mxu0 0
        %355 = vmatpush1.bf16.msra.mxu0 0
        %356 = vmatprep.subr.bf16.mxu0 0
        %357 = vmatpush1.bf16.msra.mxu0 0
        %358 = vmatprep.mubr.bf16.mxu0 0
        %359 = vmatmul.mubr.bf16.gmra.mrb[0].mxu0 %v321
        %v360 = vpop.f32.mrb[0].mxu0
        %v361 = vadd.f32 %v315, %v360
        %v362 = vpop.f32.mrb[0].mxu0
        %v363 = vpop.f32.mrb[0].mxu0
        %v364 = vadd.f32 %v318, %v363
        %v365 = vpop.f32.mrb[0].mxu0
        %366 = vdwg.mxu0
        %s367 = scalar_lea.vmem %s1, 4
        %v368 = vld [vmem:[%s367] sm:$0x3]
        %vm369 = vcmask 1046528
        %v370 = vrot.slane %v257, 1
        %v371 = vrot.slane %v258, 1
        %v372 = vsel %vm369, %v370, %v371
        %v374 = vsel %vm272, %v372, 0
        %v377 = vsel %vm276, %v368, 0
        %379 = vmatprep.subr.bf16.mxu0 0
        %380 = vmatpush1.bf16.msra.mxu0 %v377
        %381 = vmatprep.subr.bf16.mxu0 0
        %382 = vmatpush1.bf16.msra.mxu0 0
        %383 = vmatprep.subr.bf16.mxu0 0
        %384 = vmatpush1.bf16.msra.mxu0 0
        %385 = vmatprep.subr.bf16.mxu0 0
        %386 = vmatpush1.bf16.msra.mxu0 0
        %387 = vmatprep.subr.bf16.mxu0 0
        %388 = vmatpush1.bf16.msra.mxu0 0
        %389 = vmatprep.subr.bf16.mxu0 0
        %390 = vmatpush1.bf16.msra.mxu0 0
        %391 = vmatprep.subr.bf16.mxu0 0
        %392 = vmatpush1.bf16.msra.mxu0 0
        %393 = vmatprep.subr.bf16.mxu0 0
        %394 = vmatpush1.bf16.msra.mxu0 0
        %395 = vmatprep.subr.bf16.mxu0 0
        %396 = vmatpush1.bf16.msra.mxu0 0
        %397 = vmatprep.subr.bf16.mxu0 0
        %398 = vmatpush1.bf16.msra.mxu0 0
        %399 = vmatprep.subr.bf16.mxu0 0
        %400 = vmatpush1.bf16.msra.mxu0 0
        %401 = vmatprep.subr.bf16.mxu0 0
        %402 = vmatpush1.bf16.msra.mxu0 0
        %403 = vmatprep.subr.bf16.mxu0 0
        %404 = vmatpush1.bf16.msra.mxu0 0
        %405 = vmatprep.subr.bf16.mxu0 0
        %406 = vmatpush1.bf16.msra.mxu0 0
        %407 = vmatprep.subr.bf16.mxu0 0
        %408 = vmatpush1.bf16.msra.mxu0 0
        %409 = vmatprep.subr.bf16.mxu0 0
        %410 = vmatpush1.bf16.msra.mxu0 0
        %411 = vmatprep.mubr.bf16.mxu0 0
        %412 = vmatmul.mubr.bf16.gmra.mrb[0].mxu0 %v374
        %v413 = vpop.f32.mrb[0].mxu0
        %v414 = vadd.f32 0.0, %v413
        %v415 = vpop.f32.mrb[0].mxu0
        %v416 = vpop.f32.mrb[0].mxu0
        %v417 = vadd.f32 0.0, %v416
        %v418 = vpop.f32.mrb[0].mxu0
        %419 = vdwg.mxu0
        %v420 = vadd.f32 %v361, %v414
        %v421 = vadd.f32 %v364, %v417
        %s422 = scalar_lea.vmem %s1, 6
        %v423 = vld [vmem:[%s422] sm:$0x3]
        %vm424 = vsmask.f32 6400
        %v425 = vrot.slane %v261, 1
        %v426 = vrot.slane %v263, 2
        %v427 = vor.u32 %v425, %v426
        %v428 = vshrl.u32 %v258, 16
        %v430 = vrot.slane %v428, 1
        %v431 = vrot.slane %v268, 2
        %v432 = vor.u32 %v430, %v431
        %v433 = vsel %vm424, %v427, %v432
        %v435 = vsel %vm272, %v433, 0
        %v438 = vsel %vm276, %v423, 0
        %440 = vmatprep.subr.bf16.mxu0 0
        %441 = vmatpush1.bf16.msra.mxu0 %v438
        %442 = vmatprep.subr.bf16.mxu0 0
        %443 = vmatpush1.bf16.msra.mxu0 0
        %444 = vmatprep.subr.bf16.mxu0 0
        %445 = vmatpush1.bf16.msra.mxu0 0
        %446 = vmatprep.subr.bf16.mxu0 0
        %447 = vmatpush1.bf16.msra.mxu0 0
        %448 = vmatprep.subr.bf16.mxu0 0
        %449 = vmatpush1.bf16.msra.mxu0 0
        %450 = vmatprep.subr.bf16.mxu0 0
        %451 = vmatpush1.bf16.msra.mxu0 0
        %452 = vmatprep.subr.bf16.mxu0 0
        %453 = vmatpush1.bf16.msra.mxu0 0
        %454 = vmatprep.subr.bf16.mxu0 0
        %455 = vmatpush1.bf16.msra.mxu0 0
        %456 = vmatprep.subr.bf16.mxu0 0
        %457 = vmatpush1.bf16.msra.mxu0 0
        %458 = vmatprep.subr.bf16.mxu0 0
        %459 = vmatpush1.bf16.msra.mxu0 0
        %460 = vmatprep.subr.bf16.mxu0 0
        %461 = vmatpush1.bf16.msra.mxu0 0
        %462 = vmatprep.subr.bf16.mxu0 0
        %463 = vmatpush1.bf16.msra.mxu0 0
        %464 = vmatprep.subr.bf16.mxu0 0
        %465 = vmatpush1.bf16.msra.mxu0 0
        %466 = vmatprep.subr.bf16.mxu0 0
        %467 = vmatpush1.bf16.msra.mxu0 0
        %468 = vmatprep.subr.bf16.mxu0 0
        %469 = vmatpush1.bf16.msra.mxu0 0
        %470 = vmatprep.subr.bf16.mxu0 0
        %471 = vmatpush1.bf16.msra.mxu0 0
        %472 = vmatprep.mubr.bf16.mxu0 0
        %473 = vmatmul.mubr.bf16.gmra.mrb[0].mxu0 %v435
        %v474 = vpop.f32.mrb[0].mxu0
        %v475 = vadd.f32 0.0, %v474
        %v476 = vpop.f32.mrb[0].mxu0
        %v477 = vpop.f32.mrb[0].mxu0
        %v478 = vadd.f32 0.0, %v477
        %v479 = vpop.f32.mrb[0].mxu0
        %480 = vdwg.mxu0
        %v481 = vadd.f32 %v420, %v475
        %v482 = vadd.f32 %v421, %v478
        %s483 = scalar_lea.vmem %s1, 8
        %v484 = vld [vmem:[%s483] sm:$0x3]
        %vm485 = vcmask 1045504
        %v486 = vrot.slane %v257, 2
        %v487 = vrot.slane %v258, 2
        %v488 = vsel %vm485, %v486, %v487
        %v490 = vsel %vm272, %v488, 0
        %v493 = vsel %vm276, %v484, 0
        %495 = vmatprep.subr.bf16.mxu0 0
        %496 = vmatpush1.bf16.msra.mxu0 %v493
        %497 = vmatprep.subr.bf16.mxu0 0
        %498 = vmatpush1.bf16.msra.mxu0 0
        %499 = vmatprep.subr.bf16.mxu0 0
        %500 = vmatpush1.bf16.msra.mxu0 0
        %501 = vmatprep.subr.bf16.mxu0 0
        %502 = vmatpush1.bf16.msra.mxu0 0
        %503 = vmatprep.subr.bf16.mxu0 0
        %504 = vmatpush1.bf16.msra.mxu0 0
        %505 = vmatprep.subr.bf16.mxu0 0
        %506 = vmatpush1.bf16.msra.mxu0 0
        %507 = vmatprep.subr.bf16.mxu0 0
        %508 = vmatpush1.bf16.msra.mxu0 0
        %509 = vmatprep.subr.bf16.mxu0 0
        %510 = vmatpush1.bf16.msra.mxu0 0
        %511 = vmatprep.subr.bf16.mxu0 0
        %512 = vmatpush1.bf16.msra.mxu0 0
        %513 = vmatprep.subr.bf16.mxu0 0
        %514 = vmatpush1.bf16.msra.mxu0 0
        %515 = vmatprep.subr.bf16.mxu0 0
        %516 = vmatpush1.bf16.msra.mxu0 0
        %517 = vmatprep.subr.bf16.mxu0 0
        %518 = vmatpush1.bf16.msra.mxu0 0
        %519 = vmatprep.subr.bf16.mxu0 0
        %520 = vmatpush1.bf16.msra.mxu0 0
        %521 = vmatprep.subr.bf16.mxu0 0
        %522 = vmatpush1.bf16.msra.mxu0 0
        %523 = vmatprep.subr.bf16.mxu0 0
        %524 = vmatpush1.bf16.msra.mxu0 0
        %525 = vmatprep.subr.bf16.mxu0 0
        %526 = vmatpush1.bf16.msra.mxu0 0
        %527 = vmatprep.mubr.bf16.mxu0 0
        %528 = vmatmul.mubr.bf16.gmra.mrb[0].mxu0 %v490
        %v529 = vpop.f32.mrb[0].mxu0
        %v530 = vadd.f32 0.0, %v529
        %v531 = vpop.f32.mrb[0].mxu0
        %v532 = vpop.f32.mrb[0].mxu0
        %v533 = vadd.f32 0.0, %v532
        %v534 = vpop.f32.mrb[0].mxu0
        %535 = vdwg.mxu0
        %v536 = vadd.f32 %v481, %v530
        %v537 = vadd.f32 %v482, %v533
        %s538 = scalar_lea.vmem %s1, 10
        %v539 = vld [vmem:[%s538] sm:$0x3]
        %vm540 = vsmask.f32 5376
        %v541 = vrot.slane %v261, 2
        %v542 = vrot.slane %v263, 3
        %v543 = vor.u32 %v541, %v542
        %v544 = vrot.slane %v428, 2
        %v545 = vrot.slane %v268, 3
        %v546 = vor.u32 %v544, %v545
        %v547 = vsel %vm540, %v543, %v546
        %v549 = vsel %vm272, %v547, 0
        %v552 = vsel %vm276, %v539, 0
        %554 = vmatprep.subr.bf16.mxu0 0
        %555 = vmatpush1.bf16.msra.mxu0 %v552
        %556 = vmatprep.subr.bf16.mxu0 0
        %557 = vmatpush1.bf16.msra.mxu0 0
        %558 = vmatprep.subr.bf16.mxu0 0
        %559 = vmatpush1.bf16.msra.mxu0 0
        %560 = vmatprep.subr.bf16.mxu0 0
        %561 = vmatpush1.bf16.msra.mxu0 0
        %562 = vmatprep.subr.bf16.mxu0 0
        %563 = vmatpush1.bf16.msra.mxu0 0
        %564 = vmatprep.subr.bf16.mxu0 0
        %565 = vmatpush1.bf16.msra.mxu0 0
        %566 = vmatprep.subr.bf16.mxu0 0
        %567 = vmatpush1.bf16.msra.mxu0 0
        %568 = vmatprep.subr.bf16.mxu0 0
        %569 = vmatpush1.bf16.msra.mxu0 0
        %570 = vmatprep.subr.bf16.mxu0 0
        %571 = vmatpush1.bf16.msra.mxu0 0
        %572 = vmatprep.subr.bf16.mxu0 0
        %573 = vmatpush1.bf16.msra.mxu0 0
        %574 = vmatprep.subr.bf16.mxu0 0
        %575 = vmatpush1.bf16.msra.mxu0 0
        %576 = vmatprep.subr.bf16.mxu0 0
        %577 = vmatpush1.bf16.msra.mxu0 0
        %578 = vmatprep.subr.bf16.mxu0 0
        %579 = vmatpush1.bf16.msra.mxu0 0
        %580 = vmatprep.subr.bf16.mxu0 0
        %581 = vmatpush1.bf16.msra.mxu0 0
        %582 = vmatprep.subr.bf16.mxu0 0
        %583 = vmatpush1.bf16.msra.mxu0 0
        %584 = vmatprep.subr.bf16.mxu0 0
        %585 = vmatpush1.bf16.msra.mxu0 0
        %586 = vmatprep.mubr.bf16.mxu0 0
        %587 = vmatmul.mubr.bf16.gmra.mrb[0].mxu0 %v549
        %v588 = vpop.f32.mrb[0].mxu0
        %v589 = vadd.f32 0.0, %v588
        %v590 = vpop.f32.mrb[0].mxu0
        %v591 = vpop.f32.mrb[0].mxu0
        %v592 = vadd.f32 0.0, %v591
        %v593 = vpop.f32.mrb[0].mxu0
        %594 = vdwg.mxu0
        %v595 = vadd.f32 %v536, %v589
        %v596 = vadd.f32 %v537, %v592
        %s597 = scalar_lea.vmem %s1, 12
        %v598 = vld [vmem:[%s597] sm:$0x3]
        %vm599 = vcmask 1044480
        %v600 = vrot.slane %v257, 3
        %v601 = vrot.slane %v258, 3
        %v602 = vsel %vm599, %v600, %v601
        %v604 = vsel %vm272, %v602, 0
        %v607 = vsel %vm276, %v598, 0
        %609 = vmatprep.subr.bf16.mxu0 0
        %610 = vmatpush1.bf16.msra.mxu0 %v607
        %611 = vmatprep.subr.bf16.mxu0 0
        %612 = vmatpush1.bf16.msra.mxu0 0
        %613 = vmatprep.subr.bf16.mxu0 0
        %614 = vmatpush1.bf16.msra.mxu0 0
        %615 = vmatprep.subr.bf16.mxu0 0
        %616 = vmatpush1.bf16.msra.mxu0 0
        %617 = vmatprep.subr.bf16.mxu0 0
        %618 = vmatpush1.bf16.msra.mxu0 0
        %619 = vmatprep.subr.bf16.mxu0 0
        %620 = vmatpush1.bf16.msra.mxu0 0
        %621 = vmatprep.subr.bf16.mxu0 0
        %622 = vmatpush1.bf16.msra.mxu0 0
        %623 = vmatprep.subr.bf16.mxu0 0
        %624 = vmatpush1.bf16.msra.mxu0 0
        %625 = vmatprep.subr.bf16.mxu0 0
        %626 = vmatpush1.bf16.msra.mxu0 0
        %627 = vmatprep.subr.bf16.mxu0 0
        %628 = vmatpush1.bf16.msra.mxu0 0
        %629 = vmatprep.subr.bf16.mxu0 0
        %630 = vmatpush1.bf16.msra.mxu0 0
        %631 = vmatprep.subr.bf16.mxu0 0
        %632 = vmatpush1.bf16.msra.mxu0 0
        %633 = vmatprep.subr.bf16.mxu0 0
        %634 = vmatpush1.bf16.msra.mxu0 0
        %635 = vmatprep.subr.bf16.mxu0 0
        %636 = vmatpush1.bf16.msra.mxu0 0
        %637 = vmatprep.subr.bf16.mxu0 0
        %638 = vmatpush1.bf16.msra.mxu0 0
        %639 = vmatprep.subr.bf16.mxu0 0
        %640 = vmatpush1.bf16.msra.mxu0 0
        %641 = vmatprep.mubr.bf16.mxu0 0
        %642 = vmatmul.mubr.bf16.gmra.mrb[0].mxu0 %v604
        %v643 = vpop.f32.mrb[0].mxu0
        %v644 = vadd.f32 0.0, %v643
        %v645 = vpop.f32.mrb[0].mxu0
        %v646 = vpop.f32.mrb[0].mxu0
        %v647 = vadd.f32 0.0, %v646
        %v648 = vpop.f32.mrb[0].mxu0
        %649 = vdwg.mxu0
        %v650 = vadd.f32 %v595, %v644
        %v651 = vadd.f32 %v596, %v647
        %s652 = scalar_lea.vmem %s1, 14
        %v653 = vld [vmem:[%s652] sm:$0x3]
        %vm654 = vsmask.f32 4352
        %v655 = vrot.slane %v261, 3
        %v656 = vrot.slane %v263, 4
        %v657 = vor.u32 %v655, %v656
        %v658 = vrot.slane %v428, 3
        %v659 = vrot.slane %v268, 4
        %v660 = vor.u32 %v658, %v659
        %v661 = vsel %vm654, %v657, %v660
        %v663 = vsel %vm272, %v661, 0
        %v666 = vsel %vm276, %v653, 0
        %668 = vmatprep.subr.bf16.mxu0 0
        %669 = vmatpush1.bf16.msra.mxu0 %v666
        %670 = vmatprep.subr.bf16.mxu0 0
        %671 = vmatpush1.bf16.msra.mxu0 0
        %672 = vmatprep.subr.bf16.mxu0 0
        %673 = vmatpush1.bf16.msra.mxu0 0
        %674 = vmatprep.subr.bf16.mxu0 0
        %675 = vmatpush1.bf16.msra.mxu0 0
        %676 = vmatprep.subr.bf16.mxu0 0
        %677 = vmatpush1.bf16.msra.mxu0 0
        %678 = vmatprep.subr.bf16.mxu0 0
        %679 = vmatpush1.bf16.msra.mxu0 0
        %680 = vmatprep.subr.bf16.mxu0 0
        %681 = vmatpush1.bf16.msra.mxu0 0
        %682 = vmatprep.subr.bf16.mxu0 0
        %683 = vmatpush1.bf16.msra.mxu0 0
        %684 = vmatprep.subr.bf16.mxu0 0
        %685 = vmatpush1.bf16.msra.mxu0 0
        %686 = vmatprep.subr.bf16.mxu0 0
        %687 = vmatpush1.bf16.msra.mxu0 0
        %688 = vmatprep.subr.bf16.mxu0 0
        %689 = vmatpush1.bf16.msra.mxu0 0
        %690 = vmatprep.subr.bf16.mxu0 0
        %691 = vmatpush1.bf16.msra.mxu0 0
        %692 = vmatprep.subr.bf16.mxu0 0
        %693 = vmatpush1.bf16.msra.mxu0 0
        %694 = vmatprep.subr.bf16.mxu0 0
        %695 = vmatpush1.bf16.msra.mxu0 0
        %696 = vmatprep.subr.bf16.mxu0 0
        %697 = vmatpush1.bf16.msra.mxu0 0
        %698 = vmatprep.subr.bf16.mxu0 0
        %699 = vmatpush1.bf16.msra.mxu0 0
        %700 = vmatprep.mubr.bf16.mxu0 0
        %701 = vmatmul.mubr.bf16.gmra.mrb[0].mxu0 %v663
        %v702 = vpop.f32.mrb[0].mxu0
        %v703 = vadd.f32 0.0, %v702
        %v704 = vpop.f32.mrb[0].mxu0
        %v705 = vpop.f32.mrb[0].mxu0
        %v706 = vadd.f32 0.0, %v705
        %v707 = vpop.f32.mrb[0].mxu0
        %708 = vdwg.mxu0
        %v709 = vadd.f32 %v650, %v703
        %v710 = vadd.f32 %v651, %v706
        %s711 = scalar_lea.vmem %s1, 16
        %v712 = vld [vmem:[%s711] sm:$0x3]
        %v713 = vpack.c.b16 %v256, %v255
        %v715 = vsel %vm272, %v713, 0
        %v718 = vsel %vm276, %v712, 0
        %720 = vmatprep.subr.bf16.mxu0 0
        %721 = vmatpush1.bf16.msra.mxu0 %v718
        %722 = vmatprep.subr.bf16.mxu0 0
        %723 = vmatpush1.bf16.msra.mxu0 0
        %724 = vmatprep.subr.bf16.mxu0 0
        %725 = vmatpush1.bf16.msra.mxu0 0
        %726 = vmatprep.subr.bf16.mxu0 0
        %727 = vmatpush1.bf16.msra.mxu0 0
        %728 = vmatprep.subr.bf16.mxu0 0
        %729 = vmatpush1.bf16.msra.mxu0 0
        %730 = vmatprep.subr.bf16.mxu0 0
        %731 = vmatpush1.bf16.msra.mxu0 0
        %732 = vmatprep.subr.bf16.mxu0 0
        %733 = vmatpush1.bf16.msra.mxu0 0
        %734 = vmatprep.subr.bf16.mxu0 0
        %735 = vmatpush1.bf16.msra.mxu0 0
        %736 = vmatprep.subr.bf16.mxu0 0
        %737 = vmatpush1.bf16.msra.mxu0 0
        %738 = vmatprep.subr.bf16.mxu0 0
        %739 = vmatpush1.bf16.msra.mxu0 0
        %740 = vmatprep.subr.bf16.mxu0 0
        %741 = vmatpush1.bf16.msra.mxu0 0
        %742 = vmatprep.subr.bf16.mxu0 0
        %743 = vmatpush1.bf16.msra.mxu0 0
        %744 = vmatprep.subr.bf16.mxu0 0
        %745 = vmatpush1.bf16.msra.mxu0 0
        %746 = vmatprep.subr.bf16.mxu0 0
        %747 = vmatpush1.bf16.msra.mxu0 0
        %748 = vmatprep.subr.bf16.mxu0 0
        %749 = vmatpush1.bf16.msra.mxu0 0
        %750 = vmatprep.subr.bf16.mxu0 0
        %751 = vmatpush1.bf16.msra.mxu0 0
        %752 = vmatprep.mubr.bf16.mxu0 0
        %753 = vmatmul.mubr.bf16.gmra.mrb[0].mxu0 %v715
        %v754 = vpop.f32.mrb[0].mxu0
        %v755 = vadd.f32 0.0, %v754
        %v756 = vpop.f32.mrb[0].mxu0
        %v757 = vpop.f32.mrb[0].mxu0
        %v758 = vadd.f32 0.0, %v757
        %v759 = vpop.f32.mrb[0].mxu0
        %760 = vdwg.mxu0
        %v761 = vadd.f32 %v709, %v755
        %v762 = vadd.f32 %v710, %v758
        %s763 = scalar_lea.vmem %s1, 18
        %v764 = vld [vmem:[%s763] sm:$0x3]
        %v766 = vunpack.c.l.b16 %v247
        %v767 = vpack.c.b16 %v766, %v766
        %v768 = vshrl.u32 %v713, 16
        %v770 = vshll.u32 %v713, 16
        %v772 = vrot.slane %v770, 1
        %v773 = vor.u32 %v768, %v772
        %v775 = vshll.u32 %v767, 16
        %v777 = vrot.slane %v775, 1
        %v778 = vsel %vm259, %v773, %v777
        %v780 = vsel %vm272, %v778, 0
        %v783 = vsel %vm276, %v764, 0
        %785 = vmatprep.subr.bf16.mxu0 0
        %786 = vmatpush1.bf16.msra.mxu0 %v783
        %787 = vmatprep.subr.bf16.mxu0 0
        %788 = vmatpush1.bf16.msra.mxu0 0
        %789 = vmatprep.subr.bf16.mxu0 0
        %790 = vmatpush1.bf16.msra.mxu0 0
        %791 = vmatprep.subr.bf16.mxu0 0
        %792 = vmatpush1.bf16.msra.mxu0 0
        %793 = vmatprep.subr.bf16.mxu0 0
        %794 = vmatpush1.bf16.msra.mxu0 0
        %795 = vmatprep.subr.bf16.mxu0 0
        %796 = vmatpush1.bf16.msra.mxu0 0
        %797 = vmatprep.subr.bf16.mxu0 0
        %798 = vmatpush1.bf16.msra.mxu0 0
        %799 = vmatprep.subr.bf16.mxu0 0
        %800 = vmatpush1.bf16.msra.mxu0 0
        %801 = vmatprep.subr.bf16.mxu0 0
        %802 = vmatpush1.bf16.msra.mxu0 0
        %803 = vmatprep.subr.bf16.mxu0 0
        %804 = vmatpush1.bf16.msra.mxu0 0
        %805 = vmatprep.subr.bf16.mxu0 0
        %806 = vmatpush1.bf16.msra.mxu0 0
        %807 = vmatprep.subr.bf16.mxu0 0
        %808 = vmatpush1.bf16.msra.mxu0 0
        %809 = vmatprep.subr.bf16.mxu0 0
        %810 = vmatpush1.bf16.msra.mxu0 0
        %811 = vmatprep.subr.bf16.mxu0 0
        %812 = vmatpush1.bf16.msra.mxu0 0
        %813 = vmatprep.subr.bf16.mxu0 0
        %814 = vmatpush1.bf16.msra.mxu0 0
        %815 = vmatprep.subr.bf16.mxu0 0
        %816 = vmatpush1.bf16.msra.mxu0 0
        %817 = vmatprep.mubr.bf16.mxu0 0
        %818 = vmatmul.mubr.bf16.gmra.mrb[0].mxu0 %v780
        %v819 = vpop.f32.mrb[0].mxu0
        %v820 = vadd.f32 0.0, %v819
        %v821 = vpop.f32.mrb[0].mxu0
        %v822 = vpop.f32.mrb[0].mxu0
        %v823 = vadd.f32 0.0, %v822
        %v824 = vpop.f32.mrb[0].mxu0
        %825 = vdwg.mxu0
        %v826 = vadd.f32 %v761, %v820
        %v827 = vadd.f32 %v762, %v823
        %v828 = vld [vmem:[%s2] sm:$0x1]
        %v830 = vlaneseq
        %v831 = vshrl.u32 %v830, 7
        %v832 = vsub.s32 0, %v831
        %v833 = vrot.slane %v828, %v832
        %v835 = vadd.f32 %v826, %v833
        %v836 = vadd.f32 %v827, %v833
        %v837 = vmul.f32 %v835, 0.5
        %v838 = vmul.f32 %v836, 0.5
        %v839 = vmul.f32 %v835, 0.70710677
        %v840 = vmul.f32 %v836, 0.70710677
        %v841 = vmax.f32 %v839, -3.832507
        %v842 = vmax.f32 %v840, -3.832507
        %v843 = vmin.f32 %v841, 3.832507
        %v844 = vmin.f32 %v842, 3.832507
        %v845 = vmul.f32 %v843, %v843
        %v846 = vmul.f32 %v844, %v844
        %v847 = vmul.f32 %v845, 0.00022905065
        %v848 = vmul.f32 %v846, 0.00022905065
        %v849 = vadd.f32 %v847, 0.003408291
        %v850 = vadd.f32 %v848, 0.003408291
        %v851 = vmul.f32 %v849, %v845
        %v852 = vmul.f32 %v850, %v846
        %v853 = vadd.f32 %v851, 0.050955694
        %v854 = vadd.f32 %v852, 0.050955694
        %v855 = vmul.f32 %v853, %v845
        %v856 = vmul.f32 %v854, %v846
        %v857 = vadd.f32 %v855, 0.18520832
        %v858 = vadd.f32 %v856, 0.18520832
        %v859 = vmul.f32 %v857, %v845
        %v860 = vmul.f32 %v858, %v846
        %v861 = vadd.f32 %v859, 1.1283791
        %v862 = vadd.f32 %v860, 1.1283791
        %v863 = vmul.f32 %v845, -1.1791603e-07
        %v864 = vmul.f32 %v846, -1.1791603e-07
        %v865 = vadd.f32 %v863, 2.3547966e-05
        %v866 = vadd.f32 %v864, 2.3547966e-05
        %v867 = vmul.f32 %v865, %v845
        %v868 = vmul.f32 %v866, %v846
        %v869 = vadd.f32 %v867, 0.0010179626
        %v870 = vadd.f32 %v868, 0.0010179626
        %v871 = vmul.f32 %v869, %v845
        %v872 = vmul.f32 %v870, %v846
        %v873 = vadd.f32 %v871, 0.01407047
        %v874 = vadd.f32 %v872, 0.01407047
        %v875 = vmul.f32 %v873, %v845
        %v876 = vmul.f32 %v874, %v846
        %v877 = vadd.f32 %v875, 0.11098505
        %v878 = vadd.f32 %v876, 0.11098505
        %v879 = vmul.f32 %v877, %v845
        %v880 = vmul.f32 %v878, %v846
        %v881 = vadd.f32 %v879, 0.49746925
        %v882 = vadd.f32 %v880, 0.49746925
        %v883 = vmul.f32 %v881, %v845
        %v884 = vmul.f32 %v882, %v846
        %v885 = vadd.f32 %v883, 1.0
        %v886 = vadd.f32 %v884, 1.0
        %v887 = vmul.f32 %v843, %v861
        %v888 = vmul.f32 %v844, %v862
        %v889 = vrcp.pop %v885
        %v890 = vrcp.pop %v886
        %v891 = vmul.f32 %v887, %v889
        %v892 = vmul.f32 %v888, %v890
        %v893 = vadd.f32 %v891, 1.0
        %v894 = vadd.f32 %v892, 1.0
        %v895 = vmul.f32 %v837, %v893
        %v896 = vmul.f32 %v838, %v894
        %v897 = vpack.c.bf16 %v896, %v895
        %v898 = vld [vmem:[%s3] sm:$0xf]
        %v899 = vld [vmem:[%s3 + $0x4] sm:$0xf]
        %v900 = vld [vmem:[%s3 + $0x8] sm:$0xf]
        %v901 = vld [vmem:[%s3 + $0xc] sm:$0xf]
        %v902 = vld [vmem:[%s3 + $0x10] sm:$0xf]
        %v903 = vld [vmem:[%s3 + $0x14] sm:$0xf]
        %v904 = vld [vmem:[%s3 + $0x18] sm:$0xf]
        %v905 = vld [vmem:[%s3 + $0x1c] sm:$0xf]
        %v906 = vld [vmem:[%s3 + $0x20] sm:$0xf]
        %v907 = vld [vmem:[%s3 + $0x24] sm:$0xf]
        %v908 = vld [vmem:[%s3 + $0x28] sm:$0xf]
        %v909 = vld [vmem:[%s3 + $0x2c] sm:$0xf]
        %v910 = vld [vmem:[%s3 + $0x30] sm:$0xf]
        %v911 = vld [vmem:[%s3 + $0x34] sm:$0xf]
        %v912 = vld [vmem:[%s3 + $0x38] sm:$0xf]
        %v913 = vld [vmem:[%s3 + $0x3c] sm:$0xf]
        %v914 = vld [vmem:[%s4] sm:$0x1]
        %v916 = vlaneseq
        %v917 = vshrl.u32 %v916, 7
        %v918 = vsub.s32 0, %v917
        %v919 = vrot.slane %v914, %v918
        %v937 = vunpack.c.l.b16 %v898
        %v938 = vunpack.c.l.b16 %v899
        %v939 = vunpack.c.l.b16 %v900
        %v940 = vunpack.c.l.b16 %v901
        %v941 = vunpack.c.l.b16 %v902
        %v942 = vunpack.c.l.b16 %v903
        %v943 = vunpack.c.l.b16 %v904
        %v944 = vunpack.c.l.b16 %v905
        %v945 = vunpack.c.l.b16 %v906
        %v946 = vunpack.c.l.b16 %v907
        %v947 = vunpack.c.l.b16 %v908
        %v948 = vunpack.c.l.b16 %v909
        %v949 = vunpack.c.l.b16 %v910
        %v950 = vunpack.c.l.b16 %v911
        %v951 = vunpack.c.l.b16 %v912
        %v952 = vunpack.c.l.b16 %v913
        %v953 = vpack.c.b16 %v938, %v937
        %v954 = vpack.c.b16 %v940, %v939
        %v955 = vpack.c.b16 %v942, %v941
        %v956 = vpack.c.b16 %v944, %v943
        %v957 = vpack.c.b16 %v946, %v945
        %v958 = vpack.c.b16 %v948, %v947
        %v959 = vpack.c.b16 %v950, %v949
        %v960 = vpack.c.b16 %v952, %v951
        %969 = vmatprep.subr.bf16.mxu0 0
        %970 = vmatpush1.bf16.msra.mxu0 %v953
        %971 = vmatprep.subr.bf16.mxu0 0
        %972 = vmatpush1.bf16.msra.mxu0 %v954
        %973 = vmatprep.subr.bf16.mxu0 0
        %974 = vmatpush1.bf16.msra.mxu0 %v955
        %975 = vmatprep.subr.bf16.mxu0 0
        %976 = vmatpush1.bf16.msra.mxu0 %v956
        %977 = vmatprep.subr.bf16.mxu0 0
        %978 = vmatpush1.bf16.msra.mxu0 %v957
        %979 = vmatprep.subr.bf16.mxu0 0
        %980 = vmatpush1.bf16.msra.mxu0 %v958
        %981 = vmatprep.subr.bf16.mxu0 0
        %982 = vmatpush1.bf16.msra.mxu0 %v959
        %983 = vmatprep.subr.bf16.mxu0 0
        %984 = vmatpush1.bf16.msra.mxu0 %v960
        %985 = vmatprep.subr.bf16.mxu0 0
        %986 = vmatpush1.bf16.msra.mxu0 0
        %987 = vmatprep.subr.bf16.mxu0 0
        %988 = vmatpush1.bf16.msra.mxu0 0
        %989 = vmatprep.subr.bf16.mxu0 0
        %990 = vmatpush1.bf16.msra.mxu0 0
        %991 = vmatprep.subr.bf16.mxu0 0
        %992 = vmatpush1.bf16.msra.mxu0 0
        %993 = vmatprep.subr.bf16.mxu0 0
        %994 = vmatpush1.bf16.msra.mxu0 0
        %995 = vmatprep.subr.bf16.mxu0 0
        %996 = vmatpush1.bf16.msra.mxu0 0
        %997 = vmatprep.subr.bf16.mxu0 0
        %998 = vmatpush1.bf16.msra.mxu0 0
        %999 = vmatprep.subr.bf16.mxu0 0
        %1000 = vmatpush1.bf16.msra.mxu0 0
        %1001 = vmatprep.mubr.bf16.mxu0 0
        %1002 = vmatmul.mubr.bf16.gmra.mrb[0].mxu0 %v897
        %v1003 = vpop.f32.mrb[0].mxu0
        %v1004 = vadd.f32 %v919, %v1003
        %v1005 = vpop.f32.mrb[0].mxu0
        %v1006 = vpop.f32.mrb[0].mxu0
        %v1007 = vadd.f32 %v919, %v1006
        %v1008 = vpop.f32.mrb[0].mxu0
        %1009 = vdwg.mxu0
        %vm1010 = vcmask 261120
        %1011 = vst.msk [vmem:[%s231] sm:$0xff] %vm1010, %v1004
        %1012 = vst.msk [vmem:[%s231 + $0x8] sm:$0xff] %vm1010, %v1007
        %s1013 = sand.u32 %s151, 1
        %s1014 = scalar_lea.sflag [#allocation3], %s1013
        %s1015 = sand.u32 %s151, 1
        %s1016 = smul.addr %s1015, 16
        %s1017 = scalar_lea.vmem [#allocation2], %s1016
        // Predicated region
        $region41: #{tpu_custom_call.1} parent=39 // pred_check
          %p1018 = pneg %p161
        $region42: #{tpu_custom_call.1} parent=39 // pred_check_branch
          %1020 = sbr.rel (%p1018) target = $region44
        $region43: #{tpu_custom_call.1} parent=39 // pred_region
          %s1021 = smul.u32 2, %s24
          %s1023 = ssub.s32 256, 256
          %1024 = vsyncadd %s1014, %s1023
          %s1025 = smul.addr %s23, 2
          %s1026 = sadd.s32 %s1021, %s1025
          %s1027 = smul.addr %s1026, 128
          %s1028 = scalar_lea.hbm %s5, %s1027
          %s1029 = sshll.u32 %s1017, 4
          %s1030 = int_to_ptr.vmem [resolvable:$true] %s1029
          %1035 = dma.vmem_to_hbm [thread:$0]  %s1030, 256, %s1028, %s1014, 128, 128, 8
        $region44: #{tpu_custom_call.1} parent=39 // pred_fallthru
          _
      $region40: #{tpu_custom_call.1} parent=5 // pred_fallthru
        _
      %p1036 = scmp.le.s32.totalorder 2, %s14
      // Predicated region
      $region45: #{tpu_custom_call.1} parent=5 // pred_check
        %p1037 = pneg %p1036
      $region46: #{tpu_custom_call.1} parent=5 // pred_check_branch
        %1039 = sbr.rel (%p1037) target = $region48
      $region47: #{tpu_custom_call.1} parent=5 // pred_region
        %s1040 = ssub.s32 %s14, 2
        // Predicated region
        $region49: #{tpu_custom_call.1} parent=47 // pred_check
          %p1041 = pneg %p167
        $region50: #{tpu_custom_call.1} parent=47 // pred_check_branch
          %1043 = sbr.rel (%p1041) target = $region52
        $region51: #{tpu_custom_call.1} parent=47 // pred_region
          %s1044 = sand.u32 %s152, 1
          %s1045 = scalar_lea.sflag [#allocation3], %s1044
          %s1046 = sand.u32 %s152, 1
          %s1047 = smul.addr %s1046, 16
          %s1048 = scalar_lea.vmem [#allocation2], %s1047
          %1049 = dma.done %s1045, 256
        $region52: #{tpu_custom_call.1} parent=47 // pred_fallthru
          _
      $region48: #{tpu_custom_call.1} parent=5 // pred_fallthru
        _
    $region6: #{tpu_custom_call.1} parent=1 // loop_footer
      %s18 = sadd.s32 1, %s14
    $region7: #{tpu_custom_call.1} parent=1 // loop_footer_branch
      %13 = sbr.rel target = $region3
    $region8: #{tpu_custom_call.1} parent=1 // loop_exit
      _
    %1050 = vsyncpa [#allocation3], 1
    %s1051 = scalar_lea.sflag [#allocation3], 1
    %1052 = vsyncpa %s1051, 1

</llo_original>
